<compile_context>
chip_gen: v7x
topology: tpu7x:2x2x1
jax: 0.10.0
libtpu: 0.0.40
codegen_flags: <defaults>
</compile_context>

<pallas_src>
import functools

import jax
import jax.numpy as jnp
from jax.experimental import pallas as pl
from jax.experimental.pallas import tpu as pltpu

_NEG_BIG = -1.0e30   # bias of padded (fake) class lanes; exp underflows to exactly 0
_CLS = 8             # class axis padded 2 -> 8 lanes (block last dim == array last dim)


def _round_up(x, m):
    return ((x + m - 1) // m) * m


def _cdiv(a, b):
    return (a + b - 1) // b


def _k_plan(d):
    """Feature (K) axis plan -> (padded K, K tile).

    Small vocab: one lane-aligned block.  Large BOW vocab: stream 1024-wide K
    tiles so w1 never has to be fully VMEM-resident.  Idempotent on already
    padded sizes (so wrapper and prepare_params agree)."""
    if d <= 2048:
        p = _round_up(max(d, 1), 128)
        return p, p
    p = _round_up(d, 1024)
    return p, 1024


def nn3bow_kernel(x_ref, w1_ref, b1_ref, w2_ref, b2_ref, w3_ref, b3_ref,
                  o_ref, acc_ref):
    """One batch tile.  Grid = (batch tiles, K tiles).

    fc1 is accumulated over the K axis into a f32 VMEM scratch; fc2/fc3 and the
    log_softmax run on the last K step (output block is constant over K)."""
    k = pl.program_id(1)

    @pl.when(k == 0)
    def _init():
        acc_ref[...] = jnp.zeros_like(acc_ref)

    # fc1 partial product: bf16 inputs, f32 accumulation on the MXU.
    acc_ref[...] += jnp.dot(x_ref[...], w1_ref[...],
                            preferred_element_type=jnp.float32)

    @pl.when(k == pl.num_programs(1) - 1)
    def _finalize():
        # fc1 bias + ReLU (f32)
        h1 = jnp.maximum(acc_ref[...] + b1_ref[...], 0.0)            # [TB, H]
        # fc2 -> ReLU
        h2 = jnp.dot(h1.astype(jnp.bfloat16), w2_ref[...],
                     preferred_element_type=jnp.float32) + b2_ref[...]
        h2 = jnp.maximum(h2, 0.0)                                     # [TB, H]
        # fc3 (8-lane class axis; fake classes have weight 0 and bias -1e30)
        logits = jnp.dot(h2.astype(jnp.bfloat16), w3_ref[...],
                         preferred_element_type=jnp.float32) + b3_ref[...]
        # log_softmax over the class axis; fake classes drop out (exp == 0).
        m = jnp.max(logits, axis=-1, keepdims=True)
        shifted = logits - m
        lse = jnp.log(jnp.sum(jnp.exp(shifted), axis=-1, keepdims=True))
        o_ref[...] = shifted - lse                                    # [TB, 8] f32


def prepare_params(w1, b1, w2, b2, w3, b3):
    """Pad / transpose / cast the weights ONCE (not on every forward call).

    PyTorch nn.Linear conventions:
      w1: [hidden, input_size], b1: [hidden]
      w2: [hidden, hidden],     b2: [hidden]
      w3: [2, hidden],          b3: [2]"""
    hid, in_dim = w1.shape
    in_pad, _ = _k_plan(in_dim)
    hid_pad = _round_up(max(hid, 1), 128)

    w1_t = jnp.pad(jnp.asarray(w1, jnp.float32).T,
                   ((0, in_pad - in_dim), (0, hid_pad - hid))).astype(jnp.bfloat16)
    b1_p = jnp.pad(jnp.asarray(b1, jnp.float32), (0, hid_pad - hid))[None, :]

    w2_t = jnp.pad(jnp.asarray(w2, jnp.float32).T,
                   ((0, hid_pad - hid), (0, hid_pad - hid))).astype(jnp.bfloat16)
    b2_p = jnp.pad(jnp.asarray(b2, jnp.float32), (0, hid_pad - hid))[None, :]

    w3_t = jnp.pad(jnp.asarray(w3, jnp.float32).T,
                   ((0, hid_pad - hid), (0, _CLS - 2))).astype(jnp.bfloat16)
    b3_p = jnp.full((1, _CLS), _NEG_BIG, jnp.float32)
    b3_p = b3_p.at[0, :2].set(jnp.asarray(b3, jnp.float32))

    return (w1_t, b1_p, w2_t, b2_p, w3_t, b3_p)


@jax.jit
def nn3bow_forward(x, params):
    """x: [B, input_size]  ->  log-probs [B, 2] (float32)."""
    w1_t, b1_p, w2_t, b2_p, w3_t, b3_p = params
    x = jnp.asarray(x, jnp.float32)
    B, in_dim = x.shape

    in_pad, tile_k = _k_plan(w1_t.shape[0])      # idempotent on the padded size
    hid_pad = w2_t.shape[0]
    nk = in_pad // tile_k

    # ---- batch tile from an explicit VMEM working-set budget ---------------
    budget = 32 << 20                                            # fits all generations
    fixed = ((2 * tile_k * hid_pad)                              # w1 K-stream, bf16, 2 bufs
             + hid_pad * hid_pad + hid_pad * _CLS) * 2 \
            + (2 * hid_pad + _CLS) * 4                           # w2/w3 (bf16, 1 buf) + f32 biases
    per_row = (2 * tile_k * 2        # x tile, bf16, double-buffered
               + 2 * _CLS * 4        # out tile, f32, double-buffered
               + 3 * hid_pad * 4)    # f32 acc scratch + h1/h2 temporaries
    cap_vmem = max((budget - fixed) // per_row, 8)
    cap_steps = _round_up(_cdiv(B, 4), 8)    # >=2 grid steps per TensorCore (v7x) when B allows
    tile_b = int(min(512, cap_vmem, cap_steps, _round_up(B, 8)))
    tile_b = max(8, (tile_b // 8) * 8)
    if tile_b >= 128:
        tile_b = (tile_b // 128) * 128       # clean cadence on v5e's 128-wide MXU
    nb = _cdiv(B, tile_b)

    need = fixed + tile_b * per_row
    vmem_limit = int(min(max(2 * need + (4 << 20), 24 << 20), 96 << 20))

    # ---- input glue: feature pad (only if needed) + bf16 cast; NO batch pad.
    if in_pad != in_dim:
        x = jnp.pad(x, ((0, 0), (0, in_pad - in_dim)))
    x = x.astype(jnp.bfloat16)

    res1 = pl.Buffered(buffer_count=1)   # constant-index resident operands -> single buffer
    # NOTE: on v6e, if the x DMA ever shows up exposed, bump x to pl.Buffered(3).

    out = pl.pallas_call(
        nn3bow_kernel,
        out_shape=jax.ShapeDtypeStruct((B, _CLS), jnp.float32),
        grid_spec=pltpu.PrefetchScalarGridSpec(
            num_scalar_prefetch=0,
            grid=(nb, nk),
            in_specs=[
                pl.BlockSpec((tile_b, tile_k), lambda i, k: (i, k)),   # x   (pipelined)
                pl.BlockSpec((tile_k, hid_pad), lambda i, k: (k, 0)),  # w1  (K-streamed)
                pl.BlockSpec((1, hid_pad), lambda i, k: (0, 0),
                             pipeline_mode=res1),                      # b1  (resident)
                pl.BlockSpec((hid_pad, hid_pad), lambda i, k: (0, 0),
                             pipeline_mode=res1),                      # w2  (resident)
                pl.BlockSpec((1, hid_pad), lambda i, k: (0, 0),
                             pipeline_mode=res1),                      # b2  (resident)
                pl.BlockSpec((hid_pad, _CLS), lambda i, k: (0, 0),
                             pipeline_mode=res1),                      # w3  (resident)
                pl.BlockSpec((1, _CLS), lambda i, k: (0, 0),
                             pipeline_mode=res1),                      # b3  (resident)
            ],
            out_specs=pl.BlockSpec((tile_b, _CLS), lambda i, k: (i, 0)),
            scratch_shapes=[pltpu.VMEM((tile_b, hid_pad), jnp.float32)],  # fc1 accumulator
        ),
        compiler_params=pltpu.CompilerParams(
            dimension_semantics=("parallel", "arbitrary"),  # batch across TCs; K is a reduction
            vmem_limit_bytes=vmem_limit,
        ),
    )(x, w1_t, b1_p, w2_t, b2_p, w3_t, b3_p)

    # Strip the fake class lanes (ragged batch rows never existed in out_shape).
    return out[:, :2]


if __name__ == "__main__":
    # Deterministic synthetic parameters (PyTorch nn.Linear-style uniform init).
    input_size = 32
    hidden_size = 32

    key = jax.random.PRNGKey(0)
    kx, kw1, kb1, kw2, kb2, kw3, kb3, kx2 = jax.random.split(key, 8)

    bound1 = 1.0 / (input_size ** 0.5)
    w1 = jax.random.uniform(kw1, (hidden_size, input_size), jnp.float32, -bound1, bound1)
    b1 = jax.random.uniform(kb1, (hidden_size,), jnp.float32, -bound1, bound1)

    bound2 = 1.0 / (hidden_size ** 0.5)
    w2 = jax.random.uniform(kw2, (hidden_size, hidden_size), jnp.float32, -bound2, bound2)
    b2 = jax.random.uniform(kb2, (hidden_size,), jnp.float32, -bound2, bound2)

    w3 = jax.random.uniform(kw3, (2, hidden_size), jnp.float32, -bound2, bound2)
    b3 = jax.random.uniform(kb3, (2,), jnp.float32, -bound2, bound2)

    params = prepare_params(w1, b1, w2, b2, w3, b3)   # pad/transpose/cast ONCE

    def ref_forward(xx):
        h1 = jnp.maximum(xx @ w1.T + b1, 0.0)
        h2 = jnp.maximum(h1 @ w2.T + b2, 0.0)
        return jax.nn.log_softmax(h2 @ w3.T + b3, axis=1)

    # Even batch: exercises two batch-grid tiles.
    x = jax.random.normal(kx, (16, input_size), dtype=jnp.float32)
    out = jax.block_until_ready(nn3bow_forward(x, params))
    assert out.shape == (16, 2)
    assert bool(jnp.all(jnp.isfinite(out)))
    # bf16 matmuls (f32 accumulation) -> tolerance looser than pure-f32.
    assert jnp.allclose(out, ref_forward(x), atol=5e-2, rtol=1e-2), "mismatch (even batch)"

    # Ragged batch: last grid tile is partial; padded rows are simply discarded.
    x2 = jax.random.normal(kx2, (13, input_size), dtype=jnp.float32)
    out2 = jax.block_until_ready(nn3bow_forward(x2, params))
    assert out2.shape == (13, 2)
    assert bool(jnp.all(jnp.isfinite(out2)))
    assert jnp.allclose(out2, ref_forward(x2), atol=5e-2, rtol=1e-2), "mismatch (ragged batch)"

    print("KERNEL_OK")
</pallas_src>

<mosaic_0001>
module attributes {stable_mosaic.version = 11 : i64} {
  func.func @nn3bow_kernel(%arg0: i32, %arg1: i32, %arg2: memref<8x128xbf16, #tpu.memory_space<vmem>>, %arg3: memref<128x128xbf16, #tpu.memory_space<vmem>>, %arg4: memref<1x128xf32, #tpu.memory_space<vmem>>, %arg5: memref<128x128xbf16, #tpu.memory_space<vmem>>, %arg6: memref<1x128xf32, #tpu.memory_space<vmem>>, %arg7: memref<128x8xbf16, #tpu.memory_space<vmem>>, %arg8: memref<1x8xf32, #tpu.memory_space<vmem>>, %arg9: memref<8x8xf32, #tpu.memory_space<vmem>>, %arg10: memref<8x128xf32, #tpu.memory_space<vmem>>) attributes {dimension_semantics = [#tpu.dimension_semantics<parallel>, #tpu.dimension_semantics<arbitrary>], iteration_bounds = array<i64: 2, 1>, scalar_prefetch = 0 : i64, scratch_operands = 1 : i64, tpu.core_type = #tpu.core_type<tc>, window_params = [{transform_indices = @transform_0, window_bounds = array<i64: 8, 128>}, {transform_indices = @transform_1, window_bounds = array<i64: 128, 128>}, {pipeline_mode = #tpu.pipeline_mode<synchronous>, transform_indices = @transform_2, window_bounds = array<i64: 1, 128>}, {pipeline_mode = #tpu.pipeline_mode<synchronous>, transform_indices = @transform_3, window_bounds = array<i64: 128, 128>}, {pipeline_mode = #tpu.pipeline_mode<synchronous>, transform_indices = @transform_4, window_bounds = array<i64: 1, 128>}, {pipeline_mode = #tpu.pipeline_mode<synchronous>, transform_indices = @transform_5, window_bounds = array<i64: 128, 8>}, {pipeline_mode = #tpu.pipeline_mode<synchronous>, transform_indices = @transform_6, window_bounds = array<i64: 1, 8>}, {transform_indices = @transform_7, window_bounds = array<i64: 8, 8>}]} {
    %c0_i32 = arith.constant 0 : i32
    %0 = arith.cmpi eq, %arg1, %c0_i32 : i32
    %1 = arith.extui %0 : i1 to i32
    %c0_i32_0 = arith.constant 0 : i32
    %2 = arith.cmpi ne, %1, %c0_i32_0 : i32
    scf.if %2 {
      %cst_10 = arith.constant 0.000000e+00 : f32
      %12 = vector.broadcast %cst_10 : f32 to vector<8x128xf32>
      %c0_11 = arith.constant 0 : index
      %c0_12 = arith.constant 0 : index
      %13 = vector.load %arg10[%c0_11, %c0_12] : memref<8x128xf32, #tpu.memory_space<vmem>>, vector<8x128xf32>
      tpu.vector_store %arg10[%c0_11, %c0_12], %12 {strides = array<i32>} : memref<8x128xf32, #tpu.memory_space<vmem>>, vector<8x128xf32>,
    } else {
    }
    %c0 = arith.constant 0 : index
    %c0_1 = arith.constant 0 : index
    %3 = vector.load %arg10[%c0, %c0_1] : memref<8x128xf32, #tpu.memory_space<vmem>>, vector<8x128xf32>
    %c0_2 = arith.constant 0 : index
    %c0_3 = arith.constant 0 : index
    %4 = vector.load %arg2[%c0_2, %c0_3] : memref<8x128xbf16, #tpu.memory_space<vmem>>, vector<8x128xbf16>
    %c0_4 = arith.constant 0 : index
    %c0_5 = arith.constant 0 : index
    %5 = vector.load %arg3[%c0_4, %c0_5] : memref<128x128xbf16, #tpu.memory_space<vmem>>, vector<128x128xbf16>
    %cst = arith.constant dense<0.000000e+00> : vector<8x128xf32>
    %6 = tpu.matmul %4, %5, %cst {dimension_numbers = #tpu.dot_dimension_numbers<[1], [0], [0], [1], [0, 0, 1, 1], [], []>} : vector<8x128xbf16>, vector<128x128xbf16>, vector<8x128xf32> -> vector<8x128xf32>
    %7 = arith.addf %3, %6 : vector<8x128xf32>
    %c0_6 = arith.constant 0 : index
    %c0_7 = arith.constant 0 : index
    %8 = vector.load %arg10[%c0_6, %c0_7] : memref<8x128xf32, #tpu.memory_space<vmem>>, vector<8x128xf32>
    tpu.vector_store %arg10[%c0_6, %c0_7], %7 {strides = array<i32>} : memref<8x128xf32, #tpu.memory_space<vmem>>, vector<8x128xf32>,
    %c0_i32_8 = arith.constant 0 : i32
    %9 = arith.cmpi eq, %arg1, %c0_i32_8 : i32
    %10 = arith.extui %9 : i1 to i32
    %c0_i32_9 = arith.constant 0 : i32
    %11 = arith.cmpi ne, %10, %c0_i32_9 : i32
    scf.if %11 {
      %c0_10 = arith.constant 0 : index
      %c0_11 = arith.constant 0 : index
      %12 = vector.load %arg10[%c0_10, %c0_11] : memref<8x128xf32, #tpu.memory_space<vmem>>, vector<8x128xf32>
      %c0_12 = arith.constant 0 : index
      %c0_13 = arith.constant 0 : index
      %13 = vector.load %arg4[%c0_12, %c0_13] : memref<1x128xf32, #tpu.memory_space<vmem>>, vector<1x128xf32>
      %14 = vector.broadcast %13 : vector<1x128xf32> to vector<8x128xf32>
      %15 = arith.addf %12, %14 : vector<8x128xf32>
      %cst_14 = arith.constant 0.000000e+00 : f32
      %16 = vector.broadcast %cst_14 : f32 to vector<8x128xf32>
      %17 = arith.maximumf %15, %16 : vector<8x128xf32>
      %18 = arith.truncf %17 : vector<8x128xf32> to vector<8x128xbf16>
      %c0_15 = arith.constant 0 : index
      %c0_16 = arith.constant 0 : index
      %19 = vector.load %arg5[%c0_15, %c0_16] : memref<128x128xbf16, #tpu.memory_space<vmem>>, vector<128x128xbf16>
      %cst_17 = arith.constant dense<0.000000e+00> : vector<8x128xf32>
      %20 = tpu.matmul %18, %19, %cst_17 {dimension_numbers = #tpu.dot_dimension_numbers<[1], [0], [0], [1], [0, 0, 1, 1], [], []>} : vector<8x128xbf16>, vector<128x128xbf16>, vector<8x128xf32> -> vector<8x128xf32>
      %c0_18 = arith.constant 0 : index
      %c0_19 = arith.constant 0 : index
      %21 = vector.load %arg6[%c0_18, %c0_19] : memref<1x128xf32, #tpu.memory_space<vmem>>, vector<1x128xf32>
      %22 = vector.broadcast %21 : vector<1x128xf32> to vector<8x128xf32>
      %23 = arith.addf %20, %22 : vector<8x128xf32>
      %cst_20 = arith.constant 0.000000e+00 : f32
      %24 = vector.broadcast %cst_20 : f32 to vector<8x128xf32>
      %25 = arith.maximumf %23, %24 : vector<8x128xf32>
      %26 = arith.truncf %25 : vector<8x128xf32> to vector<8x128xbf16>
      %c0_21 = arith.constant 0 : index
      %c0_22 = arith.constant 0 : index
      %27 = vector.load %arg7[%c0_21, %c0_22] : memref<128x8xbf16, #tpu.memory_space<vmem>>, vector<128x8xbf16>
      %cst_23 = arith.constant dense<0.000000e+00> : vector<8x8xf32>
      %28 = tpu.matmul %26, %27, %cst_23 {dimension_numbers = #tpu.dot_dimension_numbers<[1], [0], [0], [1], [0, 0, 1, 1], [], []>} : vector<8x128xbf16>, vector<128x8xbf16>, vector<8x8xf32> -> vector<8x8xf32>
      %c0_24 = arith.constant 0 : index
      %c0_25 = arith.constant 0 : index
      %29 = vector.load %arg8[%c0_24, %c0_25] : memref<1x8xf32, #tpu.memory_space<vmem>>, vector<1x8xf32>
      %30 = vector.broadcast %29 : vector<1x8xf32> to vector<8x8xf32>
      %31 = arith.addf %28, %30 : vector<8x8xf32>
      %cst_26 = arith.constant dense<0xFF800000> : vector<8xf32>
      %32 = vector.multi_reduction <maximumf>, %31, %cst_26 [1] : vector<8x8xf32> to vector<8xf32>
      %33 = vector.shape_cast %32 : vector<8xf32> to vector<8x1xf32>
      %34 = vector.broadcast %33 : vector<8x1xf32> to vector<8x8xf32>
      %35 = arith.subf %31, %34 : vector<8x8xf32>
      %36 = math.exp %35 : vector<8x8xf32>
      %cst_27 = arith.constant dense<0.000000e+00> : vector<8xf32>
      %37 = vector.multi_reduction <add>, %36, %cst_27 [1] : vector<8x8xf32> to vector<8xf32>
      %38 = vector.shape_cast %37 : vector<8xf32> to vector<8x1xf32>
      %39 = math.log %38 : vector<8x1xf32>
      %40 = vector.broadcast %39 : vector<8x1xf32> to vector<8x8xf32>
      %41 = arith.subf %35, %40 : vector<8x8xf32>
      %c0_28 = arith.constant 0 : index
      %c0_29 = arith.constant 0 : index
      %42 = vector.load %arg9[%c0_28, %c0_29] : memref<8x8xf32, #tpu.memory_space<vmem>>, vector<8x8xf32>
      tpu.vector_store %arg9[%c0_28, %c0_29], %41 {strides = array<i32>} : memref<8x8xf32, #tpu.memory_space<vmem>>, vector<8x8xf32>,
    } else {
    }
    return
  }
  func.func @transform_0(%arg0: i32, %arg1: i32) -> (i32, i32) {
    %c0_i32 = arith.constant 0 : i32
    return %arg0, %arg1 : i32, i32
  }
  func.func @transform_1(%arg0: i32, %arg1: i32) -> (i32, i32) {
    %c0_i32 = arith.constant 0 : i32
    %c0_i32_0 = arith.constant 0 : i32
    return %arg1, %c0_i32 : i32, i32
  }
  func.func @transform_2(%arg0: i32, %arg1: i32) -> (i32, i32) {
    %c0_i32 = arith.constant 0 : i32
    %c0_i32_0 = arith.constant 0 : i32
    %c0_i32_1 = arith.constant 0 : i32
    return %c0_i32, %c0_i32_0 : i32, i32
  }
  func.func @transform_3(%arg0: i32, %arg1: i32) -> (i32, i32) {
    %c0_i32 = arith.constant 0 : i32
    %c0_i32_0 = arith.constant 0 : i32
    %c0_i32_1 = arith.constant 0 : i32
    return %c0_i32, %c0_i32_0 : i32, i32
  }
  func.func @transform_4(%arg0: i32, %arg1: i32) -> (i32, i32) {
    %c0_i32 = arith.constant 0 : i32
    %c0_i32_0 = arith.constant 0 : i32
    %c0_i32_1 = arith.constant 0 : i32
    return %c0_i32, %c0_i32_0 : i32, i32
  }
  func.func @transform_5(%arg0: i32, %arg1: i32) -> (i32, i32) {
    %c0_i32 = arith.constant 0 : i32
    %c0_i32_0 = arith.constant 0 : i32
    %c0_i32_1 = arith.constant 0 : i32
    return %c0_i32, %c0_i32_0 : i32, i32
  }
  func.func @transform_6(%arg0: i32, %arg1: i32) -> (i32, i32) {
    %c0_i32 = arith.constant 0 : i32
    %c0_i32_0 = arith.constant 0 : i32
    %c0_i32_1 = arith.constant 0 : i32
    return %c0_i32, %c0_i32_0 : i32, i32
  }
  func.func @transform_7(%arg0: i32, %arg1: i32) -> (i32, i32) {
    %c0_i32 = arith.constant 0 : i32
    %c0_i32_0 = arith.constant 0 : i32
    return %arg0, %c0_i32 : i32, i32
  }
}

</mosaic_0001>

<llo_original>
// kernel: nn3bow_forward.1
$region0: #{nn3bow_forward.1}
  #allocation0 [shape = 'u32[]', space=smem, size = 0x4, offset = 0x4, fixed_abs, tag = 'smem constant byte address 0x4 - core index']
  #allocation1 [shape = 'u32[144,128]{1,0:T(1,128)}', space=vmem, size = 0x12000, scoped, tag = 'internal scratch']
  #allocation2 [shape = 'f32[8,128]{1,0:T(8,128)}', space=vmem, size = 0x1000, scoped, tag = 'scratch operand']
  %s0 = inlined_call_operand.vmem [shape: bf16[16,128], index: 0, kind: input, shape index: {}]
  %s1 = inlined_call_operand.vmem [shape: bf16[128,128], index: 1, kind: input, shape index: {}]
  %s2 = inlined_call_operand.vmem [shape: f32[1,128], index: 2, kind: input, shape index: {}]
  %s3 = inlined_call_operand.hbm [shape: bf16[128,128], index: 3, kind: input, shape index: {}]
  %s4 = inlined_call_operand.vmem [shape: f32[1,128], index: 4, kind: input, shape index: {}]
  %s5 = inlined_call_operand.vmem [shape: bf16[128,8], index: 5, kind: input, shape index: {}]
  %s6 = inlined_call_operand.vmem [shape: f32[1,8], index: 6, kind: input, shape index: {}]
  %s7 = inlined_call_operand.vmem [shape: f32[16,8], index: 7, kind: output, shape index: {}]
  %s8 = sld [smem:[#allocation0]]
  $region73: #{nn3bow_forward.1} parent=0
    _
  %s10 = ssub.s32 1, %s8
  %s11 = scalar_select 0, %s10, %s8
  $region1: #{nn3bow_forward.1} parent=0
    #allocation3 [shape = 'u8[32768]{0}', space=vmem, size = 0x8000, scoped, tag = 'input window, operand 3, single buffered']
    #allocation4 [shape = 's32[2]{0}', space=sflag, size = 0x8, scoped, tag = 'scoped memory for nn3bow_forward.1']
    %12 = vsyncpa [#allocation4], 0
    loop: start=0, step=1, limit=4
    $region2: #{nn3bow_forward.1} parent=1 // loop_pre_header
      _
    $region3: #{nn3bow_forward.1} parent=1 // loop_header
      %s14 = sphi 0, %s18
      %p15 = scmp.ge.s32.totalorder %s14, 4
      %s21 = sphi 0, %s33
      %s22 = sphi 0, %s29
      %s23 = sphi 0, %s21
      %s24 = sphi 0, %s22
      %s25 = sphi 0, %s23
      %s26 = sphi 0, %s24
      %s38 = sphi 0, %s40
      %s41 = sphi 0, %s38
      %s42 = sphi 0, %s41
      %s58 = sphi 0, %s42
      %s64 = sphi 0, %s66
      %s67 = sphi 0, %s64
      %s68 = sphi 0, %s67
      %s84 = sphi 0, %s68
      %s88 = sphi 0, %s88
      %s90 = sphi 0, %s88
      %s91 = sphi 0, %s90
      %s105 = sphi 0, %s91
      %s109 = sphi 0, %s109
      %s111 = sphi 0, %s109
      %s112 = sphi 0, %s111
      %s126 = sphi 0, %s112
      %s130 = sphi 0, %s130
      %s132 = sphi 0, %s130
      %s133 = sphi 0, %s132
      %s147 = sphi 0, %s133
      %s151 = sphi 0, %s151
      %s153 = sphi 0, %s151
      %s154 = sphi 0, %s153
      %s168 = sphi 0, %s154
      %s172 = sphi 0, %s172
      %s174 = sphi 0, %s172
      %s175 = sphi 0, %s174
      %s189 = sphi 0, %s175
      %s195 = sphi 0, %s197
      %s198 = sphi 0, %s195
      %s199 = sphi 0, %s198
      %s215 = sphi 0, %s199
    $region4: #{nn3bow_forward.1} parent=1 // loop_header_branch
      %17 = sbr.rel (%p15) target = $region8
    $region5: #{nn3bow_forward.1} parent=1 // loop_body
      %s19 = ssub.s32 %s14, 1
      %s20 = ssub.s32 %s14, 2
      %s27 = sadd.s32 1, %s22
      %p28 = scmp.ge.s32.totalorder %s27, 1
      %s29 = scalar_select %p28, 0, %s27
      %s30 = sadd.s32 1, %s21
      %s31 = scalar_select %p28, %s30, %s21
      %p32 = scmp.ge.s32.totalorder %s31, 2
      %s33 = scalar_select %p32, 0, %s31
      %s34 = ssub.s32 %s21, %s33
      %s35 = ssub.s32 %s22, %s29
      %s36 = sor.u32 %s34, %s35
      %p37 = scmp.eq.s32.totalorder %s36, 0
      %s39 = sadd.s32 %s38, 1
      %s40 = scalar_select %p37, %s38, %s39
      %p43 = pneg %p37
      %p44 = scmp.eq.s32.totalorder %s14, 1
      %p45 = por %p43, %p44
      %p46 = scmp.ne.s32.totalorder %s38, %s41
      %p47 = scmp.eq.s32.totalorder %s14, 0
      %p48 = por %p46, %p47
      %p49 = scmp.ne.s32.totalorder %s38, %s41
      %p50 = scmp.eq.s32.totalorder %s19, 1
      %p51 = por %p49, %p50
      %p52 = scmp.ne.s32.totalorder %s41, %s42
      %p53 = scmp.eq.s32.totalorder %s19, 0
      %p54 = por %p52, %p53
      %p55 = scmp.ne.s32.totalorder %s41, %s42
      %p56 = scmp.eq.s32.totalorder %s20, 1
      %p57 = por %p55, %p56
      %p59 = scmp.ne.s32.totalorder %s42, %s58
      %p60 = scmp.eq.s32.totalorder %s20, 0
      %p61 = por %p59, %p60
      %s62 = ssub.s32 %s22, %s29
      %p63 = scmp.eq.s32.totalorder %s62, 0
      %s65 = sadd.s32 %s64, 1
      %s66 = scalar_select %p63, %s64, %s65
      %p69 = pneg %p63
      %p70 = scmp.eq.s32.totalorder %s14, 1
      %p71 = por %p69, %p70
      %p72 = scmp.ne.s32.totalorder %s64, %s67
      %p73 = scmp.eq.s32.totalorder %s14, 0
      %p74 = por %p72, %p73
      %p75 = scmp.ne.s32.totalorder %s64, %s67
      %p76 = scmp.eq.s32.totalorder %s19, 1
      %p77 = por %p75, %p76
      %p78 = scmp.ne.s32.totalorder %s67, %s68
      %p79 = scmp.eq.s32.totalorder %s19, 0
      %p80 = por %p78, %p79
      %p81 = scmp.ne.s32.totalorder %s67, %s68
      %p82 = scmp.eq.s32.totalorder %s20, 1
      %p83 = por %p81, %p82
      %p85 = scmp.ne.s32.totalorder %s68, %s84
      %p86 = scmp.eq.s32.totalorder %s20, 0
      %p87 = por %p85, %p86
      %s89 = sadd.s32 %s88, 1
      %p92 = scmp.eq.s32.totalorder %s14, 1
      %p93 = scmp.ne.s32.totalorder %s88, %s90
      %p94 = scmp.eq.s32.totalorder %s14, 0
      %p95 = por %p93, %p94
      %p96 = scmp.ne.s32.totalorder %s88, %s90
      %p97 = scmp.eq.s32.totalorder %s19, 1
      %p98 = por %p96, %p97
      %p99 = scmp.ne.s32.totalorder %s90, %s91
      %p100 = scmp.eq.s32.totalorder %s19, 0
      %p101 = por %p99, %p100
      %p102 = scmp.ne.s32.totalorder %s90, %s91
      %p103 = scmp.eq.s32.totalorder %s20, 1
      %p104 = por %p102, %p103
      %p106 = scmp.ne.s32.totalorder %s91, %s105
      %p107 = scmp.eq.s32.totalorder %s20, 0
      %p108 = por %p106, %p107
      %s110 = sadd.s32 %s109, 1
      %p113 = scmp.eq.s32.totalorder %s14, 1
      %p114 = scmp.ne.s32.totalorder %s109, %s111
      %p115 = scmp.eq.s32.totalorder %s14, 0
      %p116 = por %p114, %p115
      %p117 = scmp.ne.s32.totalorder %s109, %s111
      %p118 = scmp.eq.s32.totalorder %s19, 1
      %p119 = por %p117, %p118
      %p120 = scmp.ne.s32.totalorder %s111, %s112
      %p121 = scmp.eq.s32.totalorder %s19, 0
      %p122 = por %p120, %p121
      %p123 = scmp.ne.s32.totalorder %s111, %s112
      %p124 = scmp.eq.s32.totalorder %s20, 1
      %p125 = por %p123, %p124
      %p127 = scmp.ne.s32.totalorder %s112, %s126
      %p128 = scmp.eq.s32.totalorder %s20, 0
      %p129 = por %p127, %p128
      %s131 = sadd.s32 %s130, 1
      %p134 = scmp.eq.s32.totalorder %s14, 1
      %p135 = scmp.ne.s32.totalorder %s130, %s132
      %p136 = scmp.eq.s32.totalorder %s14, 0
      %p137 = por %p135, %p136
      %p138 = scmp.ne.s32.totalorder %s130, %s132
      %p139 = scmp.eq.s32.totalorder %s19, 1
      %p140 = por %p138, %p139
      %p141 = scmp.ne.s32.totalorder %s132, %s133
      %p142 = scmp.eq.s32.totalorder %s19, 0
      %p143 = por %p141, %p142
      %p144 = scmp.ne.s32.totalorder %s132, %s133
      %p145 = scmp.eq.s32.totalorder %s20, 1
      %p146 = por %p144, %p145
      %p148 = scmp.ne.s32.totalorder %s133, %s147
      %p149 = scmp.eq.s32.totalorder %s20, 0
      %p150 = por %p148, %p149
      %s152 = sadd.s32 %s151, 1
      %p155 = scmp.eq.s32.totalorder %s14, 1
      %p156 = scmp.ne.s32.totalorder %s151, %s153
      %p157 = scmp.eq.s32.totalorder %s14, 0
      %p158 = por %p156, %p157
      %p159 = scmp.ne.s32.totalorder %s151, %s153
      %p160 = scmp.eq.s32.totalorder %s19, 1
      %p161 = por %p159, %p160
      %p162 = scmp.ne.s32.totalorder %s153, %s154
      %p163 = scmp.eq.s32.totalorder %s19, 0
      %p164 = por %p162, %p163
      %p165 = scmp.ne.s32.totalorder %s153, %s154
      %p166 = scmp.eq.s32.totalorder %s20, 1
      %p167 = por %p165, %p166
      %p169 = scmp.ne.s32.totalorder %s154, %s168
      %p170 = scmp.eq.s32.totalorder %s20, 0
      %p171 = por %p169, %p170
      %s173 = sadd.s32 %s172, 1
      %p176 = scmp.eq.s32.totalorder %s14, 1
      %p177 = scmp.ne.s32.totalorder %s172, %s174
      %p178 = scmp.eq.s32.totalorder %s14, 0
      %p179 = por %p177, %p178
      %p180 = scmp.ne.s32.totalorder %s172, %s174
      %p181 = scmp.eq.s32.totalorder %s19, 1
      %p182 = por %p180, %p181
      %p183 = scmp.ne.s32.totalorder %s174, %s175
      %p184 = scmp.eq.s32.totalorder %s19, 0
      %p185 = por %p183, %p184
      %p186 = scmp.ne.s32.totalorder %s174, %s175
      %p187 = scmp.eq.s32.totalorder %s20, 1
      %p188 = por %p186, %p187
      %p190 = scmp.ne.s32.totalorder %s175, %s189
      %p191 = scmp.eq.s32.totalorder %s20, 0
      %p192 = por %p190, %p191
      %s193 = ssub.s32 %s21, %s33
      %p194 = scmp.eq.s32.totalorder %s193, 0
      %s196 = sadd.s32 %s195, 1
      %s197 = scalar_select %p194, %s195, %s196
      %p200 = pneg %p194
      %p201 = scmp.eq.s32.totalorder %s14, 1
      %p202 = por %p200, %p201
      %p203 = scmp.ne.s32.totalorder %s195, %s198
      %p204 = scmp.eq.s32.totalorder %s14, 0
      %p205 = por %p203, %p204
      %p206 = scmp.ne.s32.totalorder %s195, %s198
      %p207 = scmp.eq.s32.totalorder %s19, 1
      %p208 = por %p206, %p207
      %p209 = scmp.ne.s32.totalorder %s198, %s199
      %p210 = scmp.eq.s32.totalorder %s19, 0
      %p211 = por %p209, %p210
      %p212 = scmp.ne.s32.totalorder %s198, %s199
      %p213 = scmp.eq.s32.totalorder %s20, 1
      %p214 = por %p212, %p213
      %p216 = scmp.ne.s32.totalorder %s199, %s215
      %p217 = scmp.eq.s32.totalorder %s20, 0
      %p218 = por %p216, %p217
      %p219 = scmp.le.s32.totalorder 1, %s14
      %p220 = scmp.lt.s32.totalorder %s14, 3
      %p221 = pnand %p219, %p220
      %p222 = pneg %p221
      // Predicated region
      $region9: #{nn3bow_forward.1} parent=5 // pred_check
        _
      $region10: #{nn3bow_forward.1} parent=5 // pred_check_branch
        %224 = sbr.rel (%p221) target = $region12
      $region11: #{nn3bow_forward.1} parent=5 // pred_region
        %s225 = ssub.s32 %s14, 1
        // Predicated region
        $region13: #{nn3bow_forward.1} parent=11 // pred_check
          %p226 = pneg %p80
        $region14: #{nn3bow_forward.1} parent=11 // pred_check_branch
          %228 = sbr.rel (%p226) target = $region16
        $region15: #{nn3bow_forward.1} parent=11 // pred_region
          %s229 = smul.u32 16, %s24
          %p230 = scmp.lt.s32.totalorder %s229, 15
          %s231 = scalar_select %p230, %s229, 15
          %s232 = smul.addr %s231, 4
          %s233 = scalar_lea.vmem %s1, %s232
          %s234 = smul.u32 16, %s24
        $region16: #{nn3bow_forward.1} parent=11 // pred_fallthru
          _
        // Predicated region
        $region17: #{nn3bow_forward.1} parent=11 // pred_check
          %p235 = pneg %p101
        $region18: #{nn3bow_forward.1} parent=11 // pred_check_branch
          %237 = sbr.rel (%p235) target = $region20
        $region19: #{nn3bow_forward.1} parent=11 // pred_region
          _
        $region20: #{nn3bow_forward.1} parent=11 // pred_fallthru
          _
        // Predicated region
        $region21: #{nn3bow_forward.1} parent=11 // pred_check
          %p238 = pneg %p122
        $region22: #{nn3bow_forward.1} parent=11 // pred_check_branch
          %240 = sbr.rel (%p238) target = $region24
        $region23: #{nn3bow_forward.1} parent=11 // pred_region
          %s242 = ssub.s32 1024, 1024
          %243 = vsyncadd [#allocation4], %s242
          %s244 = sshll.u32 [#allocation3], 4
          %s245 = int_to_ptr.vmem [resolvable:$true] %s244
          %250 = dma.hbm_to_vmem [thread:$0]  %s3, 1024, %s245, [#allocation4], 64, 64, 4
        $region24: #{nn3bow_forward.1} parent=11 // pred_fallthru
          _
        // Predicated region
        $region25: #{nn3bow_forward.1} parent=11 // pred_check
          %p251 = pneg %p143
        $region26: #{nn3bow_forward.1} parent=11 // pred_check_branch
          %253 = sbr.rel (%p251) target = $region28
        $region27: #{nn3bow_forward.1} parent=11 // pred_region
          _
        $region28: #{nn3bow_forward.1} parent=11 // pred_fallthru
          _
        // Predicated region
        $region29: #{nn3bow_forward.1} parent=11 // pred_check
          %p254 = pneg %p164
        $region30: #{nn3bow_forward.1} parent=11 // pred_check_branch
          %256 = sbr.rel (%p254) target = $region32
        $region31: #{nn3bow_forward.1} parent=11 // pred_region
          _
        $region32: #{nn3bow_forward.1} parent=11 // pred_fallthru
          _
        // Predicated region
        $region33: #{nn3bow_forward.1} parent=11 // pred_check
          %p257 = pneg %p185
        $region34: #{nn3bow_forward.1} parent=11 // pred_check_branch
          %259 = sbr.rel (%p257) target = $region36
        $region35: #{nn3bow_forward.1} parent=11 // pred_region
          _
        $region36: #{nn3bow_forward.1} parent=11 // pred_fallthru
          _
      $region12: #{nn3bow_forward.1} parent=5 // pred_fallthru
        _
      %p260 = scmp.lt.s32.totalorder %s14, 2
      // Predicated region
      $region37: #{nn3bow_forward.1} parent=5 // pred_check
        %p261 = pneg %p260
      $region38: #{nn3bow_forward.1} parent=5 // pred_check_branch
        %263 = sbr.rel (%p261) target = $region40
      $region39: #{nn3bow_forward.1} parent=5 // pred_region
        // Predicated region
        $region41: #{nn3bow_forward.1} parent=39 // pred_check
          %p264 = pneg %p48
        $region42: #{nn3bow_forward.1} parent=39 // pred_check_branch
          %266 = sbr.rel (%p264) target = $region44
        $region43: #{nn3bow_forward.1} parent=39 // pred_region
          %p267 = scmp.lt.s32.totalorder %s21, 1
          %s268 = scalar_select %p267, %s21, 1
          %p269 = scmp.lt.s32.totalorder %s22, 0
          %s270 = scalar_select %p269, %s22, 0
          %s271 = sadd.s32 %s270, %s268
          %s272 = smul.addr %s271, 4
          %s273 = scalar_lea.vmem %s0, %s272
        $region44: #{nn3bow_forward.1} parent=39 // pred_fallthru
          _
      $region40: #{nn3bow_forward.1} parent=5 // pred_fallthru
        _
      %p274 = scmp.le.s32.totalorder 1, %s14
      %p275 = scmp.lt.s32.totalorder %s14, 3
      %p276 = pnand %p274, %p275
      %p277 = pneg %p276
      // Predicated region
      $region45: #{nn3bow_forward.1} parent=5 // pred_check
        _
      $region46: #{nn3bow_forward.1} parent=5 // pred_check_branch
        %279 = sbr.rel (%p276) target = $region48
      $region47: #{nn3bow_forward.1} parent=5 // pred_region
        %s280 = ssub.s32 %s14, 1
        // Predicated region
        $region49: #{nn3bow_forward.1} parent=47 // pred_check
          %p281 = pneg %p122
        $region50: #{nn3bow_forward.1} parent=47 // pred_check_branch
          %283 = sbr.rel (%p281) target = $region52
        $region51: #{nn3bow_forward.1} parent=47 // pred_region
          %284 = dma.done [#allocation4], 1024
        $region52: #{nn3bow_forward.1} parent=47 // pred_fallthru
          _
        %p285 = scmp.lt.s32.totalorder %s23, 1
        %s286 = scalar_select %p285, %s23, 1
        %p287 = scmp.lt.s32.totalorder %s24, 0
        %s288 = scalar_select %p287, %s24, 0
        %s289 = sadd.s32 %s288, %s286
        %s290 = smul.addr %s289, 4
        %s291 = scalar_lea.vmem %s0, %s290
        %p292 = pneg %p54
        %p293 = pneg %p51
        %s294 = smul.u32 16, %s24
        %p295 = scmp.lt.s32.totalorder %s294, 15
        %s296 = scalar_select %p295, %s294, 15
        %s297 = smul.addr %s296, 4
        %s298 = scalar_lea.vmem %s1, %s297
        %p299 = pneg %p80
        %p300 = pneg %p77
        %p301 = pneg %p101
        %p302 = pneg %p98
        %p303 = pneg %p122
        %p304 = pneg %p119
        %p305 = pneg %p143
        %p306 = pneg %p140
        %p307 = pneg %p164
        %p308 = pneg %p161
        %p309 = pneg %p185
        %p310 = pneg %p182
        %p311 = pneg %p211
        %p312 = pneg %p208
        %p313 = scmp.lt.s32.totalorder %s23, 1
        %s314 = scalar_select %p313, %s23, 1
        %s315 = smul.addr %s314, 8
        %s316 = scalar_lea.vmem %s7, %s315
        %p317 = scmp.lt.s32.totalorder %s23, 1
        %s318 = scalar_select %p317, %s23, 1
        %p319 = scmp.lt.s32.totalorder %s24, 0
        %s320 = scalar_select %p319, %s24, 0
        %s321 = sadd.s32 %s320, %s318
        %s322 = smul.addr %s321, 4
        %s323 = scalar_lea.vmem %s0, %s322
        %s324 = smul.u32 16, %s24
        %p325 = scmp.lt.s32.totalorder %s324, 15
        %s326 = scalar_select %p325, %s324, 15
        %s327 = smul.addr %s326, 4
        %s328 = scalar_lea.vmem %s1, %s327
        %s329 = smul.u32 16, %s24
        %p330 = scmp.lt.s32.totalorder %s23, 1
        %s331 = scalar_select %p330, %s23, 1
        %s332 = smul.addr %s331, 8
        %s333 = scalar_lea.vmem %s7, %s332
        %p335 = scmp.eq.s32.totalorder %s24, 0
        // Predicated region
        $region53: #{nn3bow_forward.1} parent=47 // pred_check
          %p336 = pneg %p335
        $region54: #{nn3bow_forward.1} parent=47 // pred_check_branch
          %338 = sbr.rel (%p336) target = $region56
        $region55: #{nn3bow_forward.1} parent=47 // pred_region
          %339 = vst [vmem:[#allocation2] sm:$0xff] 0.0
        $region56: #{nn3bow_forward.1} parent=47 // pred_fallthru
          _
        %v340 = vld [vmem:[#allocation2] sm:$0xff]
        %v341 = vld [vmem:[%s323] sm:$0xf]
        %v342 = vld [vmem:[%s328] sm:$0xf]
        %v343 = vld [vmem:[%s328 + $0x4] sm:$0xf]
        %v344 = vld [vmem:[%s328 + $0x8] sm:$0xf]
        %v345 = vld [vmem:[%s328 + $0xc] sm:$0xf]
        %v346 = vld [vmem:[%s328 + $0x10] sm:$0xf]
        %v347 = vld [vmem:[%s328 + $0x14] sm:$0xf]
        %v348 = vld [vmem:[%s328 + $0x18] sm:$0xf]
        %v349 = vld [vmem:[%s328 + $0x1c] sm:$0xf]
        %v350 = vld [vmem:[%s328 + $0x20] sm:$0xf]
        %v351 = vld [vmem:[%s328 + $0x24] sm:$0xf]
        %v352 = vld [vmem:[%s328 + $0x28] sm:$0xf]
        %v353 = vld [vmem:[%s328 + $0x2c] sm:$0xf]
        %v354 = vld [vmem:[%s328 + $0x30] sm:$0xf]
        %v355 = vld [vmem:[%s328 + $0x34] sm:$0xf]
        %v356 = vld [vmem:[%s328 + $0x38] sm:$0xf]
        %v357 = vld [vmem:[%s328 + $0x3c] sm:$0xf]
        %v374 = vunpack.c.l.b16 %v342
        %v375 = vunpack.c.l.b16 %v343
        %v376 = vunpack.c.l.b16 %v344
        %v377 = vunpack.c.l.b16 %v345
        %v378 = vunpack.c.l.b16 %v346
        %v379 = vunpack.c.l.b16 %v347
        %v380 = vunpack.c.l.b16 %v348
        %v381 = vunpack.c.l.b16 %v349
        %v382 = vunpack.c.l.b16 %v350
        %v383 = vunpack.c.l.b16 %v351
        %v384 = vunpack.c.l.b16 %v352
        %v385 = vunpack.c.l.b16 %v353
        %v386 = vunpack.c.l.b16 %v354
        %v387 = vunpack.c.l.b16 %v355
        %v388 = vunpack.c.l.b16 %v356
        %v389 = vunpack.c.l.b16 %v357
        %v390 = vpack.c.b16 %v375, %v374
        %v391 = vpack.c.b16 %v377, %v376
        %v392 = vpack.c.b16 %v379, %v378
        %v393 = vpack.c.b16 %v381, %v380
        %v394 = vpack.c.b16 %v383, %v382
        %v395 = vpack.c.b16 %v385, %v384
        %v396 = vpack.c.b16 %v387, %v386
        %v397 = vpack.c.b16 %v389, %v388
        %406 = vmatprep.subr.bf16.mxu0 0
        %407 = vmatpush1.bf16.msra.mxu0 %v390
        %408 = vmatprep.subr.bf16.mxu0 0
        %409 = vmatpush1.bf16.msra.mxu0 %v391
        %410 = vmatprep.subr.bf16.mxu0 0
        %411 = vmatpush1.bf16.msra.mxu0 %v392
        %412 = vmatprep.subr.bf16.mxu0 0
        %413 = vmatpush1.bf16.msra.mxu0 %v393
        %414 = vmatprep.subr.bf16.mxu0 0
        %415 = vmatpush1.bf16.msra.mxu0 %v394
        %416 = vmatprep.subr.bf16.mxu0 0
        %417 = vmatpush1.bf16.msra.mxu0 %v395
        %418 = vmatprep.subr.bf16.mxu0 0
        %419 = vmatpush1.bf16.msra.mxu0 %v396
        %420 = vmatprep.subr.bf16.mxu0 0
        %421 = vmatpush1.bf16.msra.mxu0 %v397
        %422 = vmatprep.subr.bf16.mxu0 0
        %423 = vmatpush1.bf16.msra.mxu0 0
        %424 = vmatprep.subr.bf16.mxu0 0
        %425 = vmatpush1.bf16.msra.mxu0 0
        %426 = vmatprep.subr.bf16.mxu0 0
        %427 = vmatpush1.bf16.msra.mxu0 0
        %428 = vmatprep.subr.bf16.mxu0 0
        %429 = vmatpush1.bf16.msra.mxu0 0
        %430 = vmatprep.subr.bf16.mxu0 0
        %431 = vmatpush1.bf16.msra.mxu0 0
        %432 = vmatprep.subr.bf16.mxu0 0
        %433 = vmatpush1.bf16.msra.mxu0 0
        %434 = vmatprep.subr.bf16.mxu0 0
        %435 = vmatpush1.bf16.msra.mxu0 0
        %436 = vmatprep.subr.bf16.mxu0 0
        %437 = vmatpush1.bf16.msra.mxu0 0
        %438 = vmatprep.mubr.bf16.mxu0 0
        %439 = vmatmul.mubr.bf16.gmra.mrb[0].mxu0 %v341
        %v440 = vpop.f32.mrb[0].mxu0
        %v441 = vadd.f32 0.0, %v440
        %v442 = vpop.f32.mrb[0].mxu0
        %v443 = vpop.f32.mrb[0].mxu0
        %v444 = vpop.f32.mrb[0].mxu0
        %445 = vdwg.mxu0
        %v446 = vadd.f32 %v340, %v441
        %447 = vst [vmem:[#allocation2] sm:$0xff] %v446
        // Predicated region
        $region57: #{nn3bow_forward.1} parent=47 // pred_check
          %p448 = pneg %p335
        $region58: #{nn3bow_forward.1} parent=47 // pred_check_branch
          %450 = sbr.rel (%p448) target = $region60
        $region59: #{nn3bow_forward.1} parent=47 // pred_region
          %v451 = vld [vmem:[#allocation2] sm:$0xff]
          %v452 = vld [vmem:[%s2] sm:$0x1]
          %v454 = vlaneseq
          %v455 = vshrl.u32 %v454, 7
          %v456 = vsub.s32 0, %v455
          %v457 = vrot.slane %v452, %v456
          %v459 = vadd.f32 %v451, %v457
          %v460 = vmax.f32 %v459, 0.0
          %v461 = vpack.c.bf16 %v460, %v460
          %v462 = vld [vmem:[#allocation3] sm:$0xf]
          %v463 = vld [vmem:[#allocation3 + $0x4] sm:$0xf]
          %v464 = vld [vmem:[#allocation3 + $0x8] sm:$0xf]
          %v465 = vld [vmem:[#allocation3 + $0xc] sm:$0xf]
          %v466 = vld [vmem:[#allocation3 + $0x10] sm:$0xf]
          %v467 = vld [vmem:[#allocation3 + $0x14] sm:$0xf]
          %v468 = vld [vmem:[#allocation3 + $0x18] sm:$0xf]
          %v469 = vld [vmem:[#allocation3 + $0x1c] sm:$0xf]
          %v470 = vld [vmem:[#allocation3 + $0x20] sm:$0xf]
          %v471 = vld [vmem:[#allocation3 + $0x24] sm:$0xf]
          %v472 = vld [vmem:[#allocation3 + $0x28] sm:$0xf]
          %v473 = vld [vmem:[#allocation3 + $0x2c] sm:$0xf]
          %v474 = vld [vmem:[#allocation3 + $0x30] sm:$0xf]
          %v475 = vld [vmem:[#allocation3 + $0x34] sm:$0xf]
          %v476 = vld [vmem:[#allocation3 + $0x38] sm:$0xf]
          %v477 = vld [vmem:[#allocation3 + $0x3c] sm:$0xf]
          %v478 = vld [vmem:[%s4] sm:$0x1]
          %v480 = vlaneseq
          %v481 = vshrl.u32 %v480, 7
          %v482 = vsub.s32 0, %v481
          %v483 = vrot.slane %v478, %v482
          %v501 = vunpack.c.l.b16 %v462
          %v502 = vunpack.c.l.b16 %v463
          %v503 = vunpack.c.l.b16 %v464
          %v504 = vunpack.c.l.b16 %v465
          %v505 = vunpack.c.l.b16 %v466
          %v506 = vunpack.c.l.b16 %v467
          %v507 = vunpack.c.l.b16 %v468
          %v508 = vunpack.c.l.b16 %v469
          %v509 = vunpack.c.l.b16 %v470
          %v510 = vunpack.c.l.b16 %v471
          %v511 = vunpack.c.l.b16 %v472
          %v512 = vunpack.c.l.b16 %v473
          %v513 = vunpack.c.l.b16 %v474
          %v514 = vunpack.c.l.b16 %v475
          %v515 = vunpack.c.l.b16 %v476
          %v516 = vunpack.c.l.b16 %v477
          %v517 = vpack.c.b16 %v502, %v501
          %v518 = vpack.c.b16 %v504, %v503
          %v519 = vpack.c.b16 %v506, %v505
          %v520 = vpack.c.b16 %v508, %v507
          %v521 = vpack.c.b16 %v510, %v509
          %v522 = vpack.c.b16 %v512, %v511
          %v523 = vpack.c.b16 %v514, %v513
          %v524 = vpack.c.b16 %v516, %v515
          %533 = vmatprep.subr.bf16.mxu0 0
          %534 = vmatpush1.bf16.msra.mxu0 %v517
          %535 = vmatprep.subr.bf16.mxu0 0
          %536 = vmatpush1.bf16.msra.mxu0 %v518
          %537 = vmatprep.subr.bf16.mxu0 0
          %538 = vmatpush1.bf16.msra.mxu0 %v519
          %539 = vmatprep.subr.bf16.mxu0 0
          %540 = vmatpush1.bf16.msra.mxu0 %v520
          %541 = vmatprep.subr.bf16.mxu0 0
          %542 = vmatpush1.bf16.msra.mxu0 %v521
          %543 = vmatprep.subr.bf16.mxu0 0
          %544 = vmatpush1.bf16.msra.mxu0 %v522
          %545 = vmatprep.subr.bf16.mxu0 0
          %546 = vmatpush1.bf16.msra.mxu0 %v523
          %547 = vmatprep.subr.bf16.mxu0 0
          %548 = vmatpush1.bf16.msra.mxu0 %v524
          %549 = vmatprep.subr.bf16.mxu0 0
          %550 = vmatpush1.bf16.msra.mxu0 0
          %551 = vmatprep.subr.bf16.mxu0 0
          %552 = vmatpush1.bf16.msra.mxu0 0
          %553 = vmatprep.subr.bf16.mxu0 0
          %554 = vmatpush1.bf16.msra.mxu0 0
          %555 = vmatprep.subr.bf16.mxu0 0
          %556 = vmatpush1.bf16.msra.mxu0 0
          %557 = vmatprep.subr.bf16.mxu0 0
          %558 = vmatpush1.bf16.msra.mxu0 0
          %559 = vmatprep.subr.bf16.mxu0 0
          %560 = vmatpush1.bf16.msra.mxu0 0
          %561 = vmatprep.subr.bf16.mxu0 0
          %562 = vmatpush1.bf16.msra.mxu0 0
          %563 = vmatprep.subr.bf16.mxu0 0
          %564 = vmatpush1.bf16.msra.mxu0 0
          %565 = vmatprep.mubr.bf16.mxu0 0
          %566 = vmatmul.mubr.bf16.gmra.mrb[0].mxu0 %v461
          %v567 = vpop.f32.mrb[0].mxu0
          %v568 = vadd.f32 %v483, %v567
          %v569 = vpop.f32.mrb[0].mxu0
          %v570 = vpop.f32.mrb[0].mxu0
          %v571 = vpop.f32.mrb[0].mxu0
          %572 = vdwg.mxu0
          %v573 = vmax.f32 %v568, 0.0
          %v574 = vpack.c.bf16 %v573, %v573
          %v575 = vld [vmem:[%s5] sm:$0xf]
          %v576 = vld [vmem:[%s5 + $0x4] sm:$0xf]
          %v577 = vld [vmem:[%s5 + $0x8] sm:$0xf]
          %v578 = vld [vmem:[%s5 + $0xc] sm:$0xf]
          %v579 = vld [vmem:[%s5 + $0x10] sm:$0xf]
          %v580 = vld [vmem:[%s5 + $0x14] sm:$0xf]
          %v581 = vld [vmem:[%s5 + $0x18] sm:$0xf]
          %v582 = vld [vmem:[%s5 + $0x1c] sm:$0xf]
          %v583 = vld [vmem:[%s5 + $0x20] sm:$0xf]
          %v584 = vld [vmem:[%s5 + $0x24] sm:$0xf]
          %v585 = vld [vmem:[%s5 + $0x28] sm:$0xf]
          %v586 = vld [vmem:[%s5 + $0x2c] sm:$0xf]
          %v587 = vld [vmem:[%s5 + $0x30] sm:$0xf]
          %v588 = vld [vmem:[%s5 + $0x34] sm:$0xf]
          %v589 = vld [vmem:[%s5 + $0x38] sm:$0xf]
          %v590 = vld [vmem:[%s5 + $0x3c] sm:$0xf]
          %v591 = vld [vmem:[%s6] sm:$0x1]
          %v593 = vlaneseq
          %v594 = vshrl.u32 %v593, 7
          %v595 = vsub.s32 0, %v594
          %v596 = vrot.slane %v591, %v595
          %v614 = vunpack.c.l.b16 %v575
          %v615 = vunpack.c.l.b16 %v576
          %v616 = vunpack.c.l.b16 %v577
          %v617 = vunpack.c.l.b16 %v578
          %v618 = vunpack.c.l.b16 %v579
          %v619 = vunpack.c.l.b16 %v580
          %v620 = vunpack.c.l.b16 %v581
          %v621 = vunpack.c.l.b16 %v582
          %v622 = vunpack.c.l.b16 %v583
          %v623 = vunpack.c.l.b16 %v584
          %v624 = vunpack.c.l.b16 %v585
          %v625 = vunpack.c.l.b16 %v586
          %v626 = vunpack.c.l.b16 %v587
          %v627 = vunpack.c.l.b16 %v588
          %v628 = vunpack.c.l.b16 %v589
          %v629 = vunpack.c.l.b16 %v590
          %v630 = vpack.c.b16 %v615, %v614
          %v631 = vpack.c.b16 %v617, %v616
          %v632 = vpack.c.b16 %v619, %v618
          %v633 = vpack.c.b16 %v621, %v620
          %v634 = vpack.c.b16 %v623, %v622
          %v635 = vpack.c.b16 %v625, %v624
          %v636 = vpack.c.b16 %v627, %v626
          %v637 = vpack.c.b16 %v629, %v628
          %646 = vmatprep.subr.bf16.mxu0 0
          %647 = vmatpush1.bf16.msra.mxu0 %v630
          %648 = vmatprep.subr.bf16.mxu0 0
          %649 = vmatpush1.bf16.msra.mxu0 %v631
          %650 = vmatprep.subr.bf16.mxu0 0
          %651 = vmatpush1.bf16.msra.mxu0 %v632
          %652 = vmatprep.subr.bf16.mxu0 0
          %653 = vmatpush1.bf16.msra.mxu0 %v633
          %654 = vmatprep.subr.bf16.mxu0 0
          %655 = vmatpush1.bf16.msra.mxu0 %v634
          %656 = vmatprep.subr.bf16.mxu0 0
          %657 = vmatpush1.bf16.msra.mxu0 %v635
          %658 = vmatprep.subr.bf16.mxu0 0
          %659 = vmatpush1.bf16.msra.mxu0 %v636
          %660 = vmatprep.subr.bf16.mxu0 0
          %661 = vmatpush1.bf16.msra.mxu0 %v637
          %662 = vmatprep.subr.bf16.mxu0 0
          %663 = vmatpush1.bf16.msra.mxu0 0
          %664 = vmatprep.subr.bf16.mxu0 0
          %665 = vmatpush1.bf16.msra.mxu0 0
          %666 = vmatprep.subr.bf16.mxu0 0
          %667 = vmatpush1.bf16.msra.mxu0 0
          %668 = vmatprep.subr.bf16.mxu0 0
          %669 = vmatpush1.bf16.msra.mxu0 0
          %670 = vmatprep.subr.bf16.mxu0 0
          %671 = vmatpush1.bf16.msra.mxu0 0
          %672 = vmatprep.subr.bf16.mxu0 0
          %673 = vmatpush1.bf16.msra.mxu0 0
          %674 = vmatprep.subr.bf16.mxu0 0
          %675 = vmatpush1.bf16.msra.mxu0 0
          %676 = vmatprep.subr.bf16.mxu0 0
          %677 = vmatpush1.bf16.msra.mxu0 0
          %678 = vmatprep.mubr.bf16.mxu0 0
          %679 = vmatmul.mubr.bf16.gmra.mrb[0].mxu0 %v574
          %v680 = vpop.f32.mrb[0].mxu0
          %v681 = vadd.f32 %v596, %v680
          %v682 = vpop.f32.mrb[0].mxu0
          %v683 = vpop.f32.mrb[0].mxu0
          %v684 = vpop.f32.mrb[0].mxu0
          %685 = vdwg.mxu0
          %vm686 = vcmask 64512
          %v687 = vsel %vm686, %v681, -inf
          %688 = vmax.xlane.f32.xlu0 %v687
          %v689 = vpop.xlane.xlu0 %688
          %v690 = vsub.f32 %v681, %v689
          %v691 = vmul.f32 %v690, 1.442695
          %v692 = vpow.pop %v691
          %v693 = vsel %vm686, %v692, 0.0
          %694 = vadd.xlane.f32.xlu0 %v693
          %v695 = vpop.xlane.xlu0 %694
          %v696 = vlog2.pop %v695
          %v697 = vmul.f32 %v696, 0.6931472
          %v698 = vsub.f32 %v690, %v697
          %699 = vst.msk [vmem:[%s333] sm:$0xff] %vm686, %v698
        $region60: #{nn3bow_forward.1} parent=47 // pred_fallthru
          _
        %p700 = scmp.lt.s32.totalorder %s23, 1
        %s701 = scalar_select %p700, %s23, 1
        %s702 = smul.addr %s701, 8
        %s703 = scalar_lea.vmem %s7, %s702
        // Predicated region
        $region61: #{nn3bow_forward.1} parent=47 // pred_check
          %p704 = pneg %p208
        $region62: #{nn3bow_forward.1} parent=47 // pred_check_branch
          %706 = sbr.rel (%p704) target = $region64
        $region63: #{nn3bow_forward.1} parent=47 // pred_region
          _
        $region64: #{nn3bow_forward.1} parent=47 // pred_fallthru
          _
      $region48: #{nn3bow_forward.1} parent=5 // pred_fallthru
        _
      %p707 = scmp.le.s32.totalorder 2, %s14
      // Predicated region
      $region65: #{nn3bow_forward.1} parent=5 // pred_check
        %p708 = pneg %p707
      $region66: #{nn3bow_forward.1} parent=5 // pred_check_branch
        %710 = sbr.rel (%p708) target = $region68
      $region67: #{nn3bow_forward.1} parent=5 // pred_region
        %s711 = ssub.s32 %s14, 2
        // Predicated region
        $region69: #{nn3bow_forward.1} parent=67 // pred_check
          %p712 = pneg %p214
        $region70: #{nn3bow_forward.1} parent=67 // pred_check_branch
          %714 = sbr.rel (%p712) target = $region72
        $region71: #{nn3bow_forward.1} parent=67 // pred_region
          %p715 = scmp.lt.s32.totalorder %s25, 1
          %s716 = scalar_select %p715, %s25, 1
          %s717 = smul.addr %s716, 8
          %s718 = scalar_lea.vmem %s7, %s717
        $region72: #{nn3bow_forward.1} parent=67 // pred_fallthru
          _
      $region68: #{nn3bow_forward.1} parent=5 // pred_fallthru
        _
    $region6: #{nn3bow_forward.1} parent=1 // loop_footer
      %s18 = sadd.s32 1, %s14
    $region7: #{nn3bow_forward.1} parent=1 // loop_footer_branch
      %13 = sbr.rel target = $region3
    $region8: #{nn3bow_forward.1} parent=1 // loop_exit
      _
    %719 = vsyncpa [#allocation4], 1
    %s720 = scalar_lea.sflag [#allocation4], 1
    %721 = vsyncpa %s720, 1

</llo_original>
